<compile_context>
chip_gen: v7x
topology: tpu7x:2x2x1
jax: 0.10.0
libtpu: 0.0.40
codegen_flags: <defaults>
</compile_context>

<pallas_src>
import jax
import jax.numpy as jnp
import numpy as np
from jax.experimental import pallas as pl
from jax.experimental.pallas import tpu as pltpu


def _patch_embed_kernel(p_ref, w_ref, b_ref, o_ref):
    # p_ref: (TM, K)   w_ref: (K, E)   b_ref: (1, E)   o_ref: (TM, E)
    acc = jnp.dot(p_ref[...], w_ref[...], preferred_element_type=jnp.float32)
    o_ref[...] = (acc + b_ref[...]).astype(o_ref.dtype)


def _round_up(x, m):
    return (x + m - 1) // m * m


def _choose_row_tile(m):
    """Row tile: big blocks for MXU/DMA efficiency, but keep >=2 grid steps
    when possible so both v7x TensorCores get work."""
    if m >= 1024:
        return 256
    if m >= 256:
        return 128
    if m >= 16:
        return _round_up((m + 1) // 2, 8)
    return _round_up(max(m, 1), 8)


def patch_embedding(x, w, b, *, patch_size):
    """PatchEmbedding forward.

    x: (B, C, H, W) float32
    w: (C*P*P, E) float32 — Conv2d weight (E, C, P, P) flattened and pre-transposed,
       row index ordered (c, kh, kw)-major.
    b: (1, E) float32 — Conv2d bias.
    Returns (B, N, E) with N = (H//P)*(W//P), i.e. Conv2d -> Flatten(2,3) -> permute(0,2,1).
    """
    B, C, H, W = x.shape
    P = patch_size
    assert H % P == 0 and W % P == 0, "image size must be divisible by patch size"
    K, E = w.shape
    assert K == C * P * P, "weight rows must equal C * P * P"
    assert b.shape == (1, E)

    Hp, Wp = H // P, W // P
    N = Hp * Wp
    M = B * N

    # ---- patch extraction (layout plumbing, done once in XLA, not in-kernel) ----
    patches = x.reshape(B, C, Hp, P, Wp, P)
    patches = patches.transpose(0, 2, 4, 1, 3, 5)        # (B, Hp, Wp, C, P, P)
    patches = patches.reshape(M, K)                      # (M, K), k = (c, kh, kw)-major

    # ---- row tiling: big row blocks, padded so every block is full ----
    tm = _choose_row_tile(M)
    Mp = _round_up(M, tm)
    if Mp != M:
        patches = jnp.pad(patches, ((0, Mp - M), (0, 0)))

    grid = (Mp // tm,)
    flops = 2 * Mp * K * E
    bytes_accessed = 4 * (Mp * K + K * E + E + Mp * E)

    out_flat = pl.pallas_call(
        _patch_embed_kernel,
        out_shape=jax.ShapeDtypeStruct((Mp, E), x.dtype),
        grid=grid,
        in_specs=[
            pl.BlockSpec((tm, K), lambda i: (i, 0)),     # streamed row block of patches
            pl.BlockSpec((K, E), lambda i: (0, 0)),      # projection weight, VMEM-resident
            pl.BlockSpec((1, E), lambda i: (0, 0)),      # bias, VMEM-resident
        ],
        out_specs=pl.BlockSpec((tm, E), lambda i: (i, 0)),  # lane-dense (E = last dim)
        compiler_params=pltpu.CompilerParams(
            dimension_semantics=("parallel",),
            vmem_limit_bytes=64 * 1024 * 1024,
        ),
        cost_estimate=pl.CostEstimate(
            flops=flops, transcendentals=0, bytes_accessed=bytes_accessed),
    )(patches, w, b)

    return out_flat[:M].reshape(B, N, E)


def init_params(key, in_channels, patch_size, emb_size):
    """Synthetic Conv2d parameters, stored pre-flattened/pre-transposed for the kernel."""
    k_w, k_b = jax.random.split(key)
    K = in_channels * patch_size * patch_size
    std = 0.02
    w = (std * jax.random.normal(k_w, (K, emb_size))).astype(jnp.float32)   # (K, E)
    b = (std * jax.random.normal(k_b, (1, emb_size))).astype(jnp.float32)   # (1, E)
    return w, b


if __name__ == "__main__":
    # Small shapes consistent with the module's forward: (batch, channels, H, W).
    B, C, IMG, P, E = 2, 3, 32, 8, 128

    key = jax.random.PRNGKey(0)
    k_x, k_p = jax.random.split(key)
    x = jax.random.normal(k_x, (B, C, IMG, IMG), dtype=jnp.float32)
    w, b = init_params(k_p, C, P, E)

    out = patch_embedding(x, w, b, patch_size=P)
    jax.block_until_ready(out)

    N = (IMG // P) * (IMG // P)
    assert out.shape == (B, N, E)

    # Pure-JAX reference: Conv2d(stride=P) -> Flatten(2,3) -> permute(0,2,1).
    w_conv = w.T.reshape(E, C, P, P)                     # OIHW
    ref = jax.lax.conv_general_dilated(
        x, w_conv, window_strides=(P, P), padding="VALID",
        dimension_numbers=("NCHW", "OIHW", "NCHW"),
        precision=jax.lax.Precision.HIGHEST)             # (B, E, Hp, Wp)
    ref = ref.reshape(B, E, N).transpose(0, 2, 1) + b[0]

    np.testing.assert_allclose(np.asarray(out), np.asarray(ref), rtol=1e-2, atol=1e-2)
    print("KERNEL_OK")
</pallas_src>

<mosaic_0001>
module attributes {stable_mosaic.version = 11 : i64} {
  func.func @_patch_embed_kernel(%arg0: i32, %arg1: memref<16x192xf32, #tpu.memory_space<vmem>>, %arg2: memref<192x128xf32, #tpu.memory_space<vmem>>, %arg3: memref<1x128xf32, #tpu.memory_space<vmem>>, %arg4: memref<16x128xf32, #tpu.memory_space<vmem>>) attributes {dimension_semantics = [#tpu.dimension_semantics<parallel>], iteration_bounds = array<i64: 2>, scalar_prefetch = 0 : i64, scratch_operands = 0 : i64, tpu.core_type = #tpu.core_type<tc>, window_params = [{transform_indices = @transform_0, window_bounds = array<i64: 16, 192>}, {pipeline_mode = #tpu.pipeline_mode<synchronous>, transform_indices = @transform_1, window_bounds = array<i64: 192, 128>}, {pipeline_mode = #tpu.pipeline_mode<synchronous>, transform_indices = @transform_2, window_bounds = array<i64: 1, 128>}, {transform_indices = @transform_3, window_bounds = array<i64: 16, 128>}]} {
    %c0 = arith.constant 0 : index
    %c0_0 = arith.constant 0 : index
    %0 = vector.load %arg1[%c0, %c0_0] : memref<16x192xf32, #tpu.memory_space<vmem>>, vector<16x192xf32>
    %c0_1 = arith.constant 0 : index
    %c0_2 = arith.constant 0 : index
    %1 = vector.load %arg2[%c0_1, %c0_2] : memref<192x128xf32, #tpu.memory_space<vmem>>, vector<192x128xf32>
    %cst = arith.constant dense<0.000000e+00> : vector<16x128xf32>
    %2 = tpu.matmul %0, %1, %cst {dimension_numbers = #tpu.dot_dimension_numbers<[1], [0], [0], [1], [0, 0, 1, 1], [], []>} : vector<16x192xf32>, vector<192x128xf32>, vector<16x128xf32> -> vector<16x128xf32>
    %c0_3 = arith.constant 0 : index
    %c0_4 = arith.constant 0 : index
    %3 = vector.load %arg3[%c0_3, %c0_4] : memref<1x128xf32, #tpu.memory_space<vmem>>, vector<1x128xf32>
    %4 = vector.broadcast %3 : vector<1x128xf32> to vector<16x128xf32>
    %5 = arith.addf %2, %4 : vector<16x128xf32>
    %c0_5 = arith.constant 0 : index
    %c0_6 = arith.constant 0 : index
    %6 = vector.load %arg4[%c0_5, %c0_6] : memref<16x128xf32, #tpu.memory_space<vmem>>, vector<16x128xf32>
    tpu.vector_store %arg4[%c0_5, %c0_6], %5 {strides = array<i32>} : memref<16x128xf32, #tpu.memory_space<vmem>>, vector<16x128xf32>,
    return
  }
  func.func @transform_0(%arg0: i32) -> (i32, i32) {
    %c0_i32 = arith.constant 0 : i32
    %c0_i32_0 = arith.constant 0 : i32
    return %arg0, %c0_i32 : i32, i32
  }
  func.func @transform_1(%arg0: i32) -> (i32, i32) {
    %c0_i32 = arith.constant 0 : i32
    %c0_i32_0 = arith.constant 0 : i32
    %c0_i32_1 = arith.constant 0 : i32
    return %c0_i32, %c0_i32_0 : i32, i32
  }
  func.func @transform_2(%arg0: i32) -> (i32, i32) {
    %c0_i32 = arith.constant 0 : i32
    %c0_i32_0 = arith.constant 0 : i32
    %c0_i32_1 = arith.constant 0 : i32
    return %c0_i32, %c0_i32_0 : i32, i32
  }
  func.func @transform_3(%arg0: i32) -> (i32, i32) {
    %c0_i32 = arith.constant 0 : i32
    %c0_i32_0 = arith.constant 0 : i32
    return %arg0, %c0_i32 : i32, i32
  }
}

</mosaic_0001>

<llo_original>
// kernel: tpu_custom_call.1
$region0: #{tpu_custom_call.1}
  #allocation0 [shape = 'u32[]', space=smem, size = 0x4, offset = 0x4, fixed_abs, tag = 'smem constant byte address 0x4 - core index']
  #allocation1 [shape = 'u32[144,128]{1,0:T(1,128)}', space=vmem, size = 0x12000, scoped, tag = 'internal scratch']
  %s0 = inlined_call_operand.hbm [shape: f32[32,192], index: 0, kind: input, shape index: {}]
  %s1 = inlined_call_operand.hbm [shape: f32[192,128], index: 1, kind: input, shape index: {}]
  %s2 = inlined_call_operand.hbm [shape: f32[1,128], index: 2, kind: input, shape index: {}]
  %s3 = inlined_call_operand.hbm [shape: f32[32,128], index: 3, kind: output, shape index: {}]
  %s4 = sld [smem:[#allocation0]]
  $region57: #{tpu_custom_call.1} parent=0
    _
  %s6 = ssub.s32 1, %s4
  %s7 = scalar_select 0, %s6, %s4
  $region1: #{tpu_custom_call.1} parent=0
    #allocation2 [shape = 'u8[32768]{0}', space=vmem, size = 0x8000, scoped, tag = 'input window, operand 0']
    #allocation3 [shape = 's32[2]{0}', space=sflag, size = 0x8, scoped, tag = 'scoped memory for tpu_custom_call.1']
    #allocation4 [shape = 's32[2]{0}', space=sflag, size = 0x8, scoped, tag = 'scoped memory for tpu_custom_call.1']
    #allocation5 [shape = 'u8[98304]{0}', space=vmem, size = 0x18000, scoped, tag = 'input window, operand 1, single buffered']
    #allocation6 [shape = 's32[1]{0}', space=sflag, size = 0x4, scoped, tag = 'scoped memory for tpu_custom_call.1']
    #allocation7 [shape = 'u8[512]{0}', space=vmem, size = 0x400, scoped, tag = 'input window, operand 2, single buffered']
    #allocation8 [shape = 'u8[16384]{0}', space=vmem, size = 0x4000, scoped, tag = 'output window, operand 0']
    %8 = vsyncpa [#allocation3], 0
    %s9 = scalar_lea.sflag [#allocation3], 1
    %10 = vsyncpa %s9, 0
    %11 = vsyncpa [#allocation6], 0
    %12 = vsyncpa [#allocation4], 0
    %s13 = scalar_lea.sflag [#allocation4], 1
    %14 = vsyncpa %s13, 0
    loop: start=0, step=1, limit=4
    $region2: #{tpu_custom_call.1} parent=1 // loop_pre_header
      _
    $region3: #{tpu_custom_call.1} parent=1 // loop_header
      %s16 = sphi 0, %s20
      %p17 = scmp.ge.s32.totalorder %s16, 4
      %s26 = sphi 0, %s28
      %s29 = sphi 0, %s26
      %s30 = sphi 0, %s29
      %s46 = sphi 0, %s30
      %s50 = sphi 0, %s50
      %s52 = sphi 0, %s50
      %s53 = sphi 0, %s52
      %s67 = sphi 0, %s53
      %s71 = sphi 0, %s71
      %s73 = sphi 0, %s71
      %s74 = sphi 0, %s73
      %s88 = sphi 0, %s74
      %s94 = sphi 0, %s96
      %s97 = sphi 0, %s94
      %s98 = sphi 0, %s97
      %s114 = sphi 0, %s98
    $region4: #{tpu_custom_call.1} parent=1 // loop_header_branch
      %19 = sbr.rel (%p17) target = $region8
    $region5: #{tpu_custom_call.1} parent=1 // loop_body
      %s21 = ssub.s32 %s16, 1
      %s22 = ssub.s32 %s16, 2
      %s23 = sadd.s32 %s16, 1
      %s24 = ssub.s32 %s16, %s23
      %p25 = scmp.eq.s32.totalorder %s24, 0
      %s27 = sadd.s32 %s26, 1
      %s28 = scalar_select %p25, %s26, %s27
      %p31 = pneg %p25
      %p32 = scmp.eq.s32.totalorder %s16, 1
      %p33 = por %p31, %p32
      %p34 = scmp.ne.s32.totalorder %s26, %s29
      %p35 = scmp.eq.s32.totalorder %s16, 0
      %p36 = por %p34, %p35
      %p37 = scmp.ne.s32.totalorder %s26, %s29
      %p38 = scmp.eq.s32.totalorder %s21, 1
      %p39 = por %p37, %p38
      %p40 = scmp.ne.s32.totalorder %s29, %s30
      %p41 = scmp.eq.s32.totalorder %s21, 0
      %p42 = por %p40, %p41
      %p43 = scmp.ne.s32.totalorder %s29, %s30
      %p44 = scmp.eq.s32.totalorder %s22, 1
      %p45 = por %p43, %p44
      %p47 = scmp.ne.s32.totalorder %s30, %s46
      %p48 = scmp.eq.s32.totalorder %s22, 0
      %p49 = por %p47, %p48
      %s51 = sadd.s32 %s50, 1
      %p54 = scmp.eq.s32.totalorder %s16, 1
      %p55 = scmp.ne.s32.totalorder %s50, %s52
      %p56 = scmp.eq.s32.totalorder %s16, 0
      %p57 = por %p55, %p56
      %p58 = scmp.ne.s32.totalorder %s50, %s52
      %p59 = scmp.eq.s32.totalorder %s21, 1
      %p60 = por %p58, %p59
      %p61 = scmp.ne.s32.totalorder %s52, %s53
      %p62 = scmp.eq.s32.totalorder %s21, 0
      %p63 = por %p61, %p62
      %p64 = scmp.ne.s32.totalorder %s52, %s53
      %p65 = scmp.eq.s32.totalorder %s22, 1
      %p66 = por %p64, %p65
      %p68 = scmp.ne.s32.totalorder %s53, %s67
      %p69 = scmp.eq.s32.totalorder %s22, 0
      %p70 = por %p68, %p69
      %s72 = sadd.s32 %s71, 1
      %p75 = scmp.eq.s32.totalorder %s16, 1
      %p76 = scmp.ne.s32.totalorder %s71, %s73
      %p77 = scmp.eq.s32.totalorder %s16, 0
      %p78 = por %p76, %p77
      %p79 = scmp.ne.s32.totalorder %s71, %s73
      %p80 = scmp.eq.s32.totalorder %s21, 1
      %p81 = por %p79, %p80
      %p82 = scmp.ne.s32.totalorder %s73, %s74
      %p83 = scmp.eq.s32.totalorder %s21, 0
      %p84 = por %p82, %p83
      %p85 = scmp.ne.s32.totalorder %s73, %s74
      %p86 = scmp.eq.s32.totalorder %s22, 1
      %p87 = por %p85, %p86
      %p89 = scmp.ne.s32.totalorder %s74, %s88
      %p90 = scmp.eq.s32.totalorder %s22, 0
      %p91 = por %p89, %p90
      %s92 = ssub.s32 %s16, %s23
      %p93 = scmp.eq.s32.totalorder %s92, 0
      %s95 = sadd.s32 %s94, 1
      %s96 = scalar_select %p93, %s94, %s95
      %p99 = pneg %p93
      %p100 = scmp.eq.s32.totalorder %s16, 1
      %p101 = por %p99, %p100
      %p102 = scmp.ne.s32.totalorder %s94, %s97
      %p103 = scmp.eq.s32.totalorder %s16, 0
      %p104 = por %p102, %p103
      %p105 = scmp.ne.s32.totalorder %s94, %s97
      %p106 = scmp.eq.s32.totalorder %s21, 1
      %p107 = por %p105, %p106
      %p108 = scmp.ne.s32.totalorder %s97, %s98
      %p109 = scmp.eq.s32.totalorder %s21, 0
      %p110 = por %p108, %p109
      %p111 = scmp.ne.s32.totalorder %s97, %s98
      %p112 = scmp.eq.s32.totalorder %s22, 1
      %p113 = por %p111, %p112
      %p115 = scmp.ne.s32.totalorder %s98, %s114
      %p116 = scmp.eq.s32.totalorder %s22, 0
      %p117 = por %p115, %p116
      %p118 = scmp.le.s32.totalorder 1, %s16
      %p119 = scmp.lt.s32.totalorder %s16, 3
      %p120 = pnand %p118, %p119
      %p121 = pneg %p120
      // Predicated region
      $region9: #{tpu_custom_call.1} parent=5 // pred_check
        _
      $region10: #{tpu_custom_call.1} parent=5 // pred_check_branch
        %123 = sbr.rel (%p120) target = $region12
      $region11: #{tpu_custom_call.1} parent=5 // pred_region
        %s124 = ssub.s32 %s16, 1
        // Predicated region
        $region13: #{tpu_custom_call.1} parent=11 // pred_check
          %p125 = pneg %p63
        $region14: #{tpu_custom_call.1} parent=11 // pred_check_branch
          %127 = sbr.rel (%p125) target = $region16
        $region15: #{tpu_custom_call.1} parent=11 // pred_region
          %s129 = ssub.s32 3072, 3072
          %130 = vsyncadd [#allocation6], %s129
          %s131 = sshll.u32 [#allocation5], 4
          %s132 = int_to_ptr.vmem [resolvable:$true] %s131
          %137 = dma.hbm_to_vmem [thread:$0]  %s1, 3072, %s132, [#allocation6], 128, 128, 8
        $region16: #{tpu_custom_call.1} parent=11 // pred_fallthru
          _
        // Predicated region
        $region17: #{tpu_custom_call.1} parent=11 // pred_check
          %p138 = pneg %p84
        $region18: #{tpu_custom_call.1} parent=11 // pred_check_branch
          %140 = sbr.rel (%p138) target = $region20
        $region19: #{tpu_custom_call.1} parent=11 // pred_region
          %s142 = ssub.s32 16, 16
          %143 = vsyncadd [#allocation6], %s142
          %s145 = sshll.u32 [#allocation7], 4
          %s146 = int_to_ptr.vmem [resolvable:$true] %s145
          %148 = dma.hbm_to_vmem [thread:$0]  %s2, 16, %s146, [#allocation6]
        $region20: #{tpu_custom_call.1} parent=11 // pred_fallthru
          _
      $region12: #{tpu_custom_call.1} parent=5 // pred_fallthru
        _
      %p149 = scmp.lt.s32.totalorder %s16, 2
      // Predicated region
      $region21: #{tpu_custom_call.1} parent=5 // pred_check
        %p150 = pneg %p149
      $region22: #{tpu_custom_call.1} parent=5 // pred_check_branch
        %152 = sbr.rel (%p150) target = $region24
      $region23: #{tpu_custom_call.1} parent=5 // pred_region
        // Predicated region
        $region25: #{tpu_custom_call.1} parent=23 // pred_check
          %p153 = pneg %p36
        $region26: #{tpu_custom_call.1} parent=23 // pred_check_branch
          %155 = sbr.rel (%p153) target = $region28
        $region27: #{tpu_custom_call.1} parent=23 // pred_region
          %s156 = sand.u32 %s26, 1
          %s157 = scalar_lea.sflag [#allocation3], %s156
          %s158 = sand.u32 %s26, 1
          %s159 = smul.addr %s158, 32
          %s160 = scalar_lea.vmem [#allocation2], %s159
          %s161 = smul.u32 2, %s16
          %s163 = ssub.s32 512, 512
          %164 = vsyncadd %s157, %s163
          %s165 = smul.addr %s161, 2
          %s166 = smul.addr %s165, 128
          %s167 = scalar_lea.hbm %s0, %s166
          %s168 = sshll.u32 %s160, 4
          %s169 = int_to_ptr.vmem [resolvable:$true] %s168
          %174 = dma.hbm_to_vmem [thread:$0]  %s167, 512, %s169, %s157, 256, 256, 16
        $region28: #{tpu_custom_call.1} parent=23 // pred_fallthru
          _
      $region24: #{tpu_custom_call.1} parent=5 // pred_fallthru
        _
      %p175 = scmp.le.s32.totalorder 1, %s16
      %p176 = scmp.lt.s32.totalorder %s16, 3
      %p177 = pnand %p175, %p176
      %p178 = pneg %p177
      // Predicated region
      $region29: #{tpu_custom_call.1} parent=5 // pred_check
        _
      $region30: #{tpu_custom_call.1} parent=5 // pred_check_branch
        %180 = sbr.rel (%p177) target = $region32
      $region31: #{tpu_custom_call.1} parent=5 // pred_region
        %s181 = ssub.s32 %s16, 1
        %s182 = sand.u32 %s29, 1
        %s183 = scalar_lea.sflag [#allocation3], %s182
        %s184 = sand.u32 %s29, 1
        %s185 = smul.addr %s184, 32
        %s186 = scalar_lea.vmem [#allocation2], %s185
        // Predicated region
        $region33: #{tpu_custom_call.1} parent=31 // pred_check
          %p187 = pneg %p42
        $region34: #{tpu_custom_call.1} parent=31 // pred_check_branch
          %189 = sbr.rel (%p187) target = $region36
        $region35: #{tpu_custom_call.1} parent=31 // pred_region
          %190 = dma.done %s183, 512
        $region36: #{tpu_custom_call.1} parent=31 // pred_fallthru
          _
        // Predicated region
        $region37: #{tpu_custom_call.1} parent=31 // pred_check
          %p191 = pneg %p63
        $region38: #{tpu_custom_call.1} parent=31 // pred_check_branch
          %193 = sbr.rel (%p191) target = $region40
        $region39: #{tpu_custom_call.1} parent=31 // pred_region
          %194 = dma.done [#allocation6], 3072
        $region40: #{tpu_custom_call.1} parent=31 // pred_fallthru
          _
        // Predicated region
        $region41: #{tpu_custom_call.1} parent=31 // pred_check
          %p195 = pneg %p84
        $region42: #{tpu_custom_call.1} parent=31 // pred_check_branch
          %197 = sbr.rel (%p195) target = $region44
        $region43: #{tpu_custom_call.1} parent=31 // pred_region
          %198 = dma.done [#allocation6], 16
        $region44: #{tpu_custom_call.1} parent=31 // pred_fallthru
          _
        %s199 = sand.u32 %s29, 1
        %s200 = scalar_lea.sflag [#allocation3], %s199
        %s201 = sand.u32 %s29, 1
        %s202 = smul.addr %s201, 32
        %s203 = scalar_lea.vmem [#allocation2], %s202
        %p204 = pneg %p42
        %p205 = pneg %p39
        %p206 = pneg %p63
        %p207 = pneg %p60
        %p208 = pneg %p84
        %p209 = pneg %p81
        %p210 = pneg %p110
        %p211 = pneg %p107
        %s212 = sand.u32 %s97, 1
        %s213 = scalar_lea.sflag [#allocation4], %s212
        %s214 = sand.u32 %s97, 1
        %s215 = smul.addr %s214, 16
        %s216 = scalar_lea.vmem [#allocation8], %s215
        %s217 = smul.u32 2, %s21
        %s218 = smul.u32 2, %s21
        %v219 = vld [vmem:[%s186] sm:$0xff]
        %v220 = vld [vmem:[%s186 + $0x8] sm:$0xff]
        %v221 = vld [vmem:[%s186 + $0x10] sm:$0xff]
        %v222 = vld [vmem:[%s186 + $0x18] sm:$0xff]
        %v223 = vld [vmem:[#allocation5] sm:$0xff]
        %v224 = vld [vmem:[#allocation5 + $0x8] sm:$0xff]
        %v225 = vld [vmem:[#allocation5 + $0x10] sm:$0xff]
        %v226 = vld [vmem:[#allocation5 + $0x18] sm:$0xff]
        %v227 = vld [vmem:[#allocation5 + $0x20] sm:$0xff]
        %v228 = vld [vmem:[#allocation5 + $0x28] sm:$0xff]
        %v229 = vld [vmem:[#allocation5 + $0x30] sm:$0xff]
        %v230 = vld [vmem:[#allocation5 + $0x38] sm:$0xff]
        %v231 = vld [vmem:[#allocation5 + $0x40] sm:$0xff]
        %v232 = vld [vmem:[#allocation5 + $0x48] sm:$0xff]
        %v233 = vld [vmem:[#allocation5 + $0x50] sm:$0xff]
        %v234 = vld [vmem:[#allocation5 + $0x58] sm:$0xff]
        %v235 = vld [vmem:[#allocation5 + $0x60] sm:$0xff]
        %v236 = vld [vmem:[#allocation5 + $0x68] sm:$0xff]
        %v237 = vld [vmem:[#allocation5 + $0x70] sm:$0xff]
        %v238 = vld [vmem:[#allocation5 + $0x78] sm:$0xff]
        %v239 = vld [vmem:[#allocation5 + $0x80] sm:$0xff]
        %v240 = vld [vmem:[#allocation5 + $0x88] sm:$0xff]
        %v241 = vld [vmem:[#allocation5 + $0x90] sm:$0xff]
        %v242 = vld [vmem:[#allocation5 + $0x98] sm:$0xff]
        %v243 = vld [vmem:[#allocation5 + $0xa0] sm:$0xff]
        %v244 = vld [vmem:[#allocation5 + $0xa8] sm:$0xff]
        %v245 = vld [vmem:[#allocation5 + $0xb0] sm:$0xff]
        %v246 = vld [vmem:[#allocation5 + $0xb8] sm:$0xff]
        %v247 = vld [vmem:[#allocation7] sm:$0x1]
        %v249 = vlaneseq
        %v250 = vshrl.u32 %v249, 7
        %v251 = vsub.s32 0, %v250
        %v252 = vrot.slane %v247, %v251
        %vm254 = vcmask 523264
        %v256 = vsel %vm254, %v220, 0
        %v259 = vsel %vm254, %v222, 0
        %261 = vmatprep.subr.mxu0 0.0
        %262 = vmatpush1.msra.mxu0 %v223
        %263 = vmatprep.subr.mxu0 0.0
        %264 = vmatpush1.msra.mxu0 %v224
        %265 = vmatprep.subr.mxu0 0.0
        %266 = vmatpush1.msra.mxu0 %v225
        %267 = vmatprep.subr.mxu0 0.0
        %268 = vmatpush1.msra.mxu0 %v226
        %269 = vmatprep.subr.mxu0 0.0
        %270 = vmatpush1.msra.mxu0 %v227
        %271 = vmatprep.subr.mxu0 0.0
        %272 = vmatpush1.msra.mxu0 %v228
        %273 = vmatprep.subr.mxu0 0.0
        %274 = vmatpush1.msra.mxu0 %v229
        %275 = vmatprep.subr.mxu0 0.0
        %276 = vmatpush1.msra.mxu0 %v230
        %277 = vmatprep.subr.mxu0 0.0
        %278 = vmatpush1.msra.mxu0 %v231
        %279 = vmatprep.subr.mxu0 0.0
        %280 = vmatpush1.msra.mxu0 %v232
        %281 = vmatprep.subr.mxu0 0.0
        %282 = vmatpush1.msra.mxu0 %v233
        %283 = vmatprep.subr.mxu0 0.0
        %284 = vmatpush1.msra.mxu0 %v234
        %285 = vmatprep.subr.mxu0 0.0
        %286 = vmatpush1.msra.mxu0 %v235
        %287 = vmatprep.subr.mxu0 0.0
        %288 = vmatpush1.msra.mxu0 %v236
        %289 = vmatprep.subr.mxu0 0.0
        %290 = vmatpush1.msra.mxu0 %v237
        %291 = vmatprep.subr.mxu0 0.0
        %292 = vmatpush1.msra.mxu0 %v238
        %293 = vmatprep.subr.mxu0 0.0
        %294 = vmatpush1.msra.mxu0 %v239
        %295 = vmatprep.subr.mxu0 0.0
        %296 = vmatpush1.msra.mxu0 %v240
        %297 = vmatprep.subr.mxu0 0.0
        %298 = vmatpush1.msra.mxu0 %v241
        %299 = vmatprep.subr.mxu0 0.0
        %300 = vmatpush1.msra.mxu0 %v242
        %301 = vmatprep.subr.mxu0 0.0
        %302 = vmatpush1.msra.mxu0 %v243
        %303 = vmatprep.subr.mxu0 0.0
        %304 = vmatpush1.msra.mxu0 %v244
        %305 = vmatprep.subr.mxu0 0.0
        %306 = vmatpush1.msra.mxu0 %v245
        %307 = vmatprep.subr.mxu0 0.0
        %308 = vmatpush1.msra.mxu0 %v246
        %309 = vmatprep.subr.mxu0 0.0
        %310 = vmatpush1.msra.mxu0 0.0
        %311 = vmatprep.subr.mxu0 0.0
        %312 = vmatpush1.msra.mxu0 0.0
        %313 = vmatprep.subr.mxu0 0.0
        %314 = vmatpush1.msra.mxu0 0.0
        %315 = vmatprep.subr.mxu0 0.0
        %316 = vmatpush1.msra.mxu0 0.0
        %317 = vmatprep.subr.mxu0 0.0
        %318 = vmatpush1.msra.mxu0 0.0
        %319 = vmatprep.subr.mxu0 0.0
        %320 = vmatpush1.msra.mxu0 0.0
        %321 = vmatprep.subr.mxu0 0.0
        %322 = vmatpush1.msra.mxu0 0.0
        %323 = vmatprep.subr.mxu0 0.0
        %324 = vmatpush1.msra.mxu0 0.0
        %325 = vmatprep.mubr.f32.mxu0 %v256
        %326 = vmatmul.mubr.f32.gmra.mrb[0].mxu0 %v219
        %v327 = vpop.f32.mrb[0].mxu0
        %v328 = vadd.f32 %v252, %v327
        %v329 = vpop.f32.mrb[0].mxu0
        %330 = vmatprep.mubr.f32.mxu0 %v259
        %331 = vmatmul.mubr.f32.gmra.mrb[0].mxu0 %v221
        %v332 = vpop.f32.mrb[0].mxu0
        %v333 = vadd.f32 %v252, %v332
        %v334 = vpop.f32.mrb[0].mxu0
        %335 = vdwg.mxu0
        %336 = vst [vmem:[%s216] sm:$0xff] %v328
        %337 = vst [vmem:[%s216 + $0x8] sm:$0xff] %v333
        %s338 = sand.u32 %s97, 1
        %s339 = scalar_lea.sflag [#allocation4], %s338
        %s340 = sand.u32 %s97, 1
        %s341 = smul.addr %s340, 16
        %s342 = scalar_lea.vmem [#allocation8], %s341
        // Predicated region
        $region45: #{tpu_custom_call.1} parent=31 // pred_check
          %p343 = pneg %p107
        $region46: #{tpu_custom_call.1} parent=31 // pred_check_branch
          %345 = sbr.rel (%p343) target = $region48
        $region47: #{tpu_custom_call.1} parent=31 // pred_region
          %s346 = smul.u32 2, %s21
          %s348 = ssub.s32 256, 256
          %349 = vsyncadd %s339, %s348
          %s350 = smul.addr %s346, 128
          %s351 = scalar_lea.hbm %s3, %s350
          %s352 = sshll.u32 %s342, 4
          %s353 = int_to_ptr.vmem [resolvable:$true] %s352
          %358 = dma.vmem_to_hbm [thread:$0]  %s353, 256, %s351, %s339, 128, 128, 8
        $region48: #{tpu_custom_call.1} parent=31 // pred_fallthru
          _
      $region32: #{tpu_custom_call.1} parent=5 // pred_fallthru
        _
      %p359 = scmp.le.s32.totalorder 2, %s16
      // Predicated region
      $region49: #{tpu_custom_call.1} parent=5 // pred_check
        %p360 = pneg %p359
      $region50: #{tpu_custom_call.1} parent=5 // pred_check_branch
        %362 = sbr.rel (%p360) target = $region52
      $region51: #{tpu_custom_call.1} parent=5 // pred_region
        %s363 = ssub.s32 %s16, 2
        // Predicated region
        $region53: #{tpu_custom_call.1} parent=51 // pred_check
          %p364 = pneg %p113
        $region54: #{tpu_custom_call.1} parent=51 // pred_check_branch
          %366 = sbr.rel (%p364) target = $region56
        $region55: #{tpu_custom_call.1} parent=51 // pred_region
          %s367 = sand.u32 %s98, 1
          %s368 = scalar_lea.sflag [#allocation4], %s367
          %s369 = sand.u32 %s98, 1
          %s370 = smul.addr %s369, 16
          %s371 = scalar_lea.vmem [#allocation8], %s370
          %372 = dma.done %s368, 256
        $region56: #{tpu_custom_call.1} parent=51 // pred_fallthru
          _
      $region52: #{tpu_custom_call.1} parent=5 // pred_fallthru
        _
    $region6: #{tpu_custom_call.1} parent=1 // loop_footer
      %s20 = sadd.s32 1, %s16
    $region7: #{tpu_custom_call.1} parent=1 // loop_footer_branch
      %15 = sbr.rel target = $region3
    $region8: #{tpu_custom_call.1} parent=1 // loop_exit
      _
    %373 = vsyncpa [#allocation3], 1
    %s374 = scalar_lea.sflag [#allocation3], 1
    %375 = vsyncpa %s374, 1
    %376 = vsyncpa [#allocation6], 1
    %377 = vsyncpa [#allocation4], 1
    %s378 = scalar_lea.sflag [#allocation4], 1
    %379 = vsyncpa %s378, 1

</llo_original>
